<compile_context>
chip_gen: v5e
topology: v5e:2x2
jax: 0.10.0
libtpu: 0.0.40
codegen_flags: <defaults>
</compile_context>

<pallas_src>
import jax
import jax.numpy as jnp
from jax.experimental import pallas as pl
from jax.experimental.pallas import tpu as pltpu

_LANES = 128
_ROW_ALIGN = 512                  # multiple of 8/16/32 sublanes -> legal for any dtype
_TILE_BYTES = 4 << 20             # ~4 MiB per (rows, 128) tile of the wider dtype
_MIN_SPLIT_TILE_BYTES = 2 << 20   # only split if each tile still moves >= ~2 MiB
_PIPELINE_BUFFERS = 3             # buffers per stream on multi-tile runs


def _scalar_add_kernel(s_ref, x_ref, o_ref):
    # s_ref: (1, 1) float32 scalar in SMEM (the selected lifted_tensor[0])
    # x_ref / o_ref: (tr, 128) tiles in VMEM.
    # Compute the add in f32 and round once (PyTorch opmath parity).
    s = s_ref[0, 0]
    o_ref[...] = (x_ref[...].astype(jnp.float32) + s).astype(o_ref.dtype)


def _round_up(n: int, m: int) -> int:
    return -(-n // m) * m


def _choose_row_tile(rows: int, itemsize: int):
    """Pick rows-per-tile and grid steps for a (rows, 128) slab."""
    bytes_per_row = _LANES * itemsize
    tr_cap = max(_ROW_ALIGN, (_TILE_BYTES // bytes_per_row) // _ROW_ALIGN * _ROW_ALIGN)
    min_rows = _round_up(max(1, _MIN_SPLIT_TILE_BYTES // bytes_per_row), _ROW_ALIGN)

    if rows < 2 * min_rows:
        # Small/medium input: single full-extent block (always a legal block
        # shape); splitting would only add per-step overhead.
        return rows, 1

    # Large input: aim for >= 4 tiles (megacore sharding on v7x) while keeping
    # every tile between ~2 MiB and ~4 MiB.
    tr = min(tr_cap, max(min_rows, _round_up(pl.cdiv(rows, 4), _ROW_ALIGN)))
    return tr, pl.cdiv(rows, tr)


def _scalar_add_2d(scalar_smem: jax.Array, x2d: jax.Array, out_dtype) -> jax.Array:
    """scalar + x2d for a lane-dense (rows, 128) slab, streamed in row tiles."""
    rows = x2d.shape[0]
    itemsize = max(x2d.dtype.itemsize, jnp.dtype(out_dtype).itemsize)
    tr, steps = _choose_row_tile(rows, itemsize)

    if steps > 2:
        bufs = _PIPELINE_BUFFERS
        x_spec = pl.BlockSpec((tr, _LANES), lambda i: (i, 0),
                              pipeline_mode=pl.Buffered(bufs))
        o_spec = pl.BlockSpec((tr, _LANES), lambda i: (i, 0),
                              pipeline_mode=pl.Buffered(bufs))
    else:
        bufs = 2
        x_spec = pl.BlockSpec((tr, _LANES), lambda i: (i, 0))
        o_spec = pl.BlockSpec((tr, _LANES), lambda i: (i, 0))

    tile_in = tr * _LANES * x2d.dtype.itemsize
    tile_out = tr * _LANES * jnp.dtype(out_dtype).itemsize
    # Enough scoped VMEM for the buffered tiles plus slack; covers v5e's 16 MiB
    # default and stays inside v7x's 64 MiB physical VMEM.
    vmem_limit = min(max(bufs * (tile_in + tile_out) + (2 << 20), 16 << 20), 48 << 20)

    in_bytes = x2d.size * x2d.dtype.itemsize
    out_bytes = x2d.size * jnp.dtype(out_dtype).itemsize

    return pl.pallas_call(
        _scalar_add_kernel,
        out_shape=jax.ShapeDtypeStruct((rows, _LANES), out_dtype),
        grid_spec=pl.GridSpec(
            grid=(steps,),
            in_specs=[
                pl.BlockSpec(memory_space=pltpu.SMEM),   # (1, 1) scalar
                x_spec,                                   # streamed x tile
            ],
            out_specs=o_spec,
        ),
        compiler_params=pltpu.CompilerParams(
            dimension_semantics=("parallel",),
            vmem_limit_bytes=vmem_limit,
        ),
        cost_estimate=pl.CostEstimate(
            flops=x2d.size,
            transcendentals=0,
            bytes_accessed=in_bytes + out_bytes,
        ),
    )(scalar_smem, x2d)


def fuse_lifted_tensor_forward(lifted_tensor: jax.Array, x: jax.Array) -> jax.Array:
    """Equivalent of FuseLiftedTensor.forward: lifted_tensor[0] + x."""
    assert lifted_tensor.shape == (2,)
    orig_shape = x.shape

    # PyTorch type promotion for (0-dim float32 tensor) + x:
    #   floating x -> x.dtype, integer/bool x -> float32.
    if jnp.issubdtype(x.dtype, jnp.floating):
        out_dtype = x.dtype
    else:
        out_dtype = jnp.float32

    scalar_f32 = lifted_tensor[0].astype(jnp.float32)
    scalar_smem = scalar_f32.reshape(1, 1)

    total = x.size
    rem = total % _LANES
    n_aligned = total - rem

    if n_aligned == 0:
        # Fewer than 128 elements (or empty): not worth a kernel launch.
        return (x.astype(jnp.float32) + scalar_f32).astype(out_dtype)

    if rem == 0:
        # Fast path: free contiguous reshape to a lane-dense slab.
        x2d = x.reshape(total // _LANES, _LANES)
        out2d = _scalar_add_2d(scalar_smem, x2d, out_dtype)
        return out2d.reshape(orig_shape)

    # Ragged tail: kernel on the aligned prefix, plain-JAX add on the
    # (<128-element) remainder.
    # TODO(synk): fold the tail into a masked final tile (scalar-prefetch
    # `total` + iota mask + pltpu.store) to drop the prefix-slice/concat pass.
    x_flat = x.reshape(-1)
    head2d = x_flat[:n_aligned].reshape(n_aligned // _LANES, _LANES)
    head_out = _scalar_add_2d(scalar_smem, head2d, out_dtype).reshape(-1)
    tail_out = (x_flat[n_aligned:].astype(jnp.float32) + scalar_f32).astype(out_dtype)
    return jnp.concatenate([head_out, tail_out]).reshape(orig_shape)


if __name__ == "__main__":
    key = jax.random.PRNGKey(0)
    k_param, k_x = jax.random.split(key)

    # Deterministic "lifted tensor" of shape (2,), analogous to torch.rand(2).
    lifted_tensor = jax.random.uniform(k_param, (2,), dtype=jnp.float32)

    # Example input: small NCHW tensor (matches the module's elementwise use).
    x = jax.random.normal(k_x, (2, 4, 16, 16), dtype=jnp.float32)

    out = fuse_lifted_tensor_forward(lifted_tensor, x)
    out = jax.block_until_ready(out)

    # Reference check (pure JAX).
    ref = lifted_tensor[0] + x
    assert out.shape == x.shape and out.dtype == ref.dtype
    assert jnp.allclose(out, ref, atol=1e-6, rtol=1e-6)

    # Quick check of the ragged (size % 128 != 0) path.
    x_rag = jax.random.normal(jax.random.PRNGKey(1), (3, 100), dtype=jnp.float32)
    out_rag = jax.block_until_ready(fuse_lifted_tensor_forward(lifted_tensor, x_rag))
    ref_rag = lifted_tensor[0] + x_rag
    assert out_rag.shape == x_rag.shape and out_rag.dtype == ref_rag.dtype
    assert jnp.allclose(out_rag, ref_rag, atol=1e-6, rtol=1e-6)

    print("KERNEL_OK")
</pallas_src>

<mosaic_0001>
module attributes {stable_mosaic.version = 11 : i64} {
  func.func @_scalar_add_kernel(%arg0: i32, %arg1: memref<1x1xf32, #tpu.memory_space<smem>>, %arg2: memref<16x128xf32, #tpu.memory_space<vmem>>, %arg3: memref<16x128xf32, #tpu.memory_space<vmem>>) attributes {dimension_semantics = [#tpu.dimension_semantics<parallel>], iteration_bounds = array<i64: 1>, scalar_prefetch = 0 : i64, scratch_operands = 0 : i64, tpu.core_type = #tpu.core_type<tc>, window_params = [{transform_indices = @transform_0, window_bounds = array<i64: 1, 1>}, {transform_indices = @transform_1, window_bounds = array<i64: 16, 128>}, {transform_indices = @transform_2, window_bounds = array<i64: 16, 128>}]} {
    %c0 = arith.constant 0 : index
    %c0_0 = arith.constant 0 : index
    %0 = memref.load %arg1[%c0, %c0_0] : memref<1x1xf32, #tpu.memory_space<smem>>
    %c0_1 = arith.constant 0 : index
    %c0_2 = arith.constant 0 : index
    %1 = vector.load %arg2[%c0_1, %c0_2] : memref<16x128xf32, #tpu.memory_space<vmem>>, vector<16x128xf32>
    %2 = vector.broadcast %0 : f32 to vector<16x128xf32>
    %3 = arith.addf %1, %2 : vector<16x128xf32>
    %c0_3 = arith.constant 0 : index
    %c0_4 = arith.constant 0 : index
    %4 = vector.load %arg3[%c0_3, %c0_4] : memref<16x128xf32, #tpu.memory_space<vmem>>, vector<16x128xf32>
    tpu.vector_store %arg3[%c0_3, %c0_4], %3 {strides = array<i32>} : memref<16x128xf32, #tpu.memory_space<vmem>>, vector<16x128xf32>,
    return
  }
  func.func @transform_0(%arg0: i32) -> (i32, i32) {
    %c0_i32 = arith.constant 0 : i32
    %c0_i32_0 = arith.constant 0 : i32
    %c0_i32_1 = arith.constant 0 : i32
    return %c0_i32, %c0_i32_0 : i32, i32
  }
  func.func @transform_1(%arg0: i32) -> (i32, i32) {
    %c0_i32 = arith.constant 0 : i32
    %c0_i32_0 = arith.constant 0 : i32
    return %arg0, %c0_i32 : i32, i32
  }
  func.func @transform_2(%arg0: i32) -> (i32, i32) {
    %c0_i32 = arith.constant 0 : i32
    %c0_i32_0 = arith.constant 0 : i32
    return %arg0, %c0_i32 : i32, i32
  }
}

</mosaic_0001>

<llo_original>
// kernel: tpu_custom_call.1
$region0: #{tpu_custom_call.1}
  #allocation0 [shape = 'u32[]', space=smem, size = 0x4, offset = 0x4, fixed_abs, tag = 'smem constant byte address 0x4 - core index']
  #allocation1 [shape = 'u32[72,128]{1,0:T(1,128)}', space=vmem, size = 0x9000, scoped, tag = 'internal scratch']
  #allocation2 [shape = 'f32[1,1]{1,0:T(1,128)S(6)}', space=smem, size = 0x200, scoped, tag = 'scoped memory for tpu_custom_call.1']
  %s0 = inlined_call_operand.<no memory space> [shape: f32[1,1], index: 0, kind: input, shape index: {}]
  %s1 = inlined_call_operand.hbm [shape: f32[16,128], index: 1, kind: input, shape index: {}]
  %s2 = inlined_call_operand.hbm [shape: f32[16,128], index: 2, kind: output, shape index: {}]
  %s3 = sld [smem:[#allocation0]]
  $region22: #{tpu_custom_call.1} parent=0
    _
  %s5 = ssub.s32 1, %s3
  %s6 = scalar_select 0, %s5, %s3
  %7 = sst [smem:[#allocation2]] %s0
  $region1: #{tpu_custom_call.1} parent=0
    #allocation3 [shape = 'u8[8192]{0}', space=vmem, size = 0x2000, scoped, tag = 'input window, operand 1, single buffered']
    #allocation4 [shape = 's32[1]{0}', space=sflag, size = 0x4, scoped, tag = 'scoped memory for tpu_custom_call.1']
    #allocation5 [shape = 's32[1]{0}', space=sflag, size = 0x4, scoped, tag = 'scoped memory for tpu_custom_call.1']
    #allocation6 [shape = 'u8[8192]{0}', space=vmem, size = 0x2000, scoped, tag = 'output window, operand 0, single buffered']
    %8 = vsyncpa [#allocation4], 0
    %9 = vsyncpa [#allocation5], 0
    // Predicated region
    $region2: #{tpu_custom_call.1} parent=1 // pred_check
      _
    $region3: #{tpu_custom_call.1} parent=1 // pred_check_branch
      %11 = sbr.rel (0) target = $region5
    $region4: #{tpu_custom_call.1} parent=1 // pred_region
      _
    $region5: #{tpu_custom_call.1} parent=1 // pred_fallthru
      _
    // Predicated region
    $region6: #{tpu_custom_call.1} parent=1 // pred_check
      _
    $region7: #{tpu_custom_call.1} parent=1 // pred_check_branch
      %13 = sbr.rel (0) target = $region9
    $region8: #{tpu_custom_call.1} parent=1 // pred_region
      %15 = vsyncadd [#allocation4], 0
      %s16 = sshll.u32 %s1, 4
      %s17 = int_to_ptr.hbm [resolvable:$true] %s16
      %s18 = sshll.u32 [#allocation3], 4
      %s19 = int_to_ptr.vmem [resolvable:$true] %s18
      %24 = dma.hbm_to_vmem [thread:$0]  %s17, 256, %s19, [#allocation4], 128, 128, 8
    $region9: #{tpu_custom_call.1} parent=1 // pred_fallthru
      _
    // Predicated region
    $region10: #{tpu_custom_call.1} parent=1 // pred_check
      _
    $region11: #{tpu_custom_call.1} parent=1 // pred_check_branch
      %26 = sbr.rel (0) target = $region13
    $region12: #{tpu_custom_call.1} parent=1 // pred_region
      %28 = dma.done [#allocation4], 256
    $region13: #{tpu_custom_call.1} parent=1 // pred_fallthru
      _
    %s29 = sld [smem:[#allocation2]]
    %v30 = vld [vmem:[#allocation3] sm:$0xff]
    %v31 = vld [vmem:[#allocation3 + $0x8] sm:$0xff]
    %v32 = vstv %s29
    %v33 = vadd.f32 %v30, %v32
    %v34 = vadd.f32 %v31, %v32
    %35 = vst [vmem:[#allocation6] sm:$0xff] %v33
    %36 = vst [vmem:[#allocation6 + $0x8] sm:$0xff] %v34
    // Predicated region
    $region14: #{tpu_custom_call.1} parent=1 // pred_check
      _
    $region15: #{tpu_custom_call.1} parent=1 // pred_check_branch
      %38 = sbr.rel (0) target = $region17
    $region16: #{tpu_custom_call.1} parent=1 // pred_region
      %40 = vsyncadd [#allocation5], 0
      %s41 = sshll.u32 [#allocation6], 4
      %s42 = int_to_ptr.vmem [resolvable:$true] %s41
      %s43 = sshll.u32 %s2, 4
      %s44 = int_to_ptr.hbm [resolvable:$true] %s43
      %49 = dma.vmem_to_hbm [thread:$0]  %s42, 256, %s44, [#allocation5], 128, 128, 8
    $region17: #{tpu_custom_call.1} parent=1 // pred_fallthru
      _
    // Predicated region
    $region18: #{tpu_custom_call.1} parent=1 // pred_check
      _
    $region19: #{tpu_custom_call.1} parent=1 // pred_check_branch
      %51 = sbr.rel (0) target = $region21
    $region20: #{tpu_custom_call.1} parent=1 // pred_region
      %53 = dma.done [#allocation5], 256
    $region21: #{tpu_custom_call.1} parent=1 // pred_fallthru
      _
    %54 = vsyncpa [#allocation4], 1
    %55 = vsyncpa [#allocation5], 1

</llo_original>
